<compile_context>
chip_gen: v5e
topology: v5e:2x2
jax: 0.10.0
libtpu: 0.0.40
codegen_flags: <defaults>
</compile_context>

<pallas_src>
import jax
import jax.numpy as jnp
from jax import lax
from jax.experimental import pallas as pl
from jax.experimental.pallas import tpu as pltpu
import numpy as np


def _round_up(x, m):
    return (x + m - 1) // m * m


def _block_spec(shape, index_map, *, single_buffer=False):
    """BlockSpec helper: single_buffer=True requests Buffered(1) for
    grid-invariant operands (nothing to prefetch-overlap), with a graceful
    fallback if this JAX version has no pipeline_mode kwarg."""
    if single_buffer:
        try:
            return pl.BlockSpec(shape, index_map, pipeline_mode=pl.Buffered(1))
        except Exception:
            pass
    return pl.BlockSpec(shape, index_map)


def _vmem_limit_bytes():
    """Chip-aware scoped VMEM limit: v5e/v6e have 128 MiB, v7x only 64 MiB/TC."""
    try:
        cap = pltpu.get_tpu_info().vmem_capacity_bytes
        return int(min(cap * 3 // 4, 100 * 1024 * 1024))
    except Exception:
        return 48 * 1024 * 1024   # safe on every generation (incl. v7x 64 MiB/TC)


def bow_kernel(ids_ref, len_ref, wf_ref, bias_ref, out_ref, acc_ref):
    """grid = (batch_tiles ["parallel"], vocab_tiles ["arbitrary" reduction])."""
    vb = pl.program_id(1)

    @pl.when(vb == 0)
    def _init():
        acc_ref[...] = jnp.zeros_like(acc_ref)

    ids = ids_ref[...]                                    # (Bt, S) int32
    bt, seq = ids.shape
    v_tile = wf_ref.shape[0]

    # counts[b, v] = #{s : ids[b, s] == v + vb * v_tile}; accumulated as int32
    # (one compare + one add per token), single cast after the loop.
    vocab_iota = lax.broadcasted_iota(jnp.int32, (bt, v_tile), 1) + vb * v_tile
    counts = jnp.zeros((bt, v_tile), jnp.int32)
    if seq <= 32:                                         # small static S: unroll
        for s in range(seq):
            counts = counts + (ids[:, s:s + 1] == vocab_iota).astype(jnp.int32)
    else:                                                 # large S: bounded live ranges
        def body(s, acc):
            col = lax.dynamic_slice_in_dim(ids, s, 1, axis=1)
            return acc + (col == vocab_iota).astype(jnp.int32)
        counts = lax.fori_loop(0, seq, body, counts, unroll=8)

    # bf16 MXU feed: integer counts <= S are exact in bf16 for S < 256.
    mxu_dtype = jnp.bfloat16 if seq < 256 else jnp.float32
    acc_ref[...] += jnp.dot(counts.astype(mxu_dtype), wf_ref[...],
                            preferred_element_type=jnp.float32)

    @pl.when(vb == pl.num_programs(1) - 1)
    def _finalize():
        inv_len = pl.reciprocal(len_ref[...], approx=False)   # EUP slot, exact
        out_ref[...] = acc_ref[...] * inv_len + bias_ref[...]


def prepare_bow_weights(embed_w, linear_w, linear_b, *, weight_dtype=jnp.bfloat16):
    """One-time (hoistable) weight-side work:
    sum_s E[ids[b,s]] @ W^T == counts @ (E @ W^T), so fuse embed and linear
    into a single (V, 20) table, zero-pad to lane-dense (V_pad, N_pad)."""
    V, D = embed_w.shape
    n_cls = linear_w.shape[0]
    w_fused = embed_w.astype(jnp.float32) @ linear_w.astype(jnp.float32).T  # (V, n_cls)
    V_pad = _round_up(V, 128)
    N_pad = _round_up(n_cls, 128)
    wf = jnp.pad(w_fused, ((0, V_pad - V), (0, N_pad - n_cls))).astype(weight_dtype)
    bias2d = jnp.pad(linear_b.astype(jnp.float32)[None, :],
                     ((0, 0), (0, N_pad - n_cls)))
    return wf, bias2d, n_cls


def bag_of_words_forward(data, length, wf, bias2d, n_cls, *,
                         b_tile=512, max_v_tile=2048):
    """data: (B, S) int token ids, length: (B,) non-padding lengths,
    wf/bias2d/n_cls from prepare_bow_weights  ->  (B, n_cls) f32 logits."""
    B, S = data.shape
    V_pad, N_pad = wf.shape

    # ---- batch tiling: few, large grid steps (per-step overhead ~0.35 us).
    B8 = _round_up(B, 8)
    if B8 <= _round_up(b_tile, 8):
        # Whole batch fits one tile: use (at most) two tiles so both v7x
        # TensorCores get work under dimension_semantics=("parallel", ...).
        bt = max(8, _round_up(pl.cdiv(B8, 2), 8)) if B8 > 8 else 8
    else:
        bt = _round_up(b_tile, 8)
    B_pad = _round_up(B8, bt)

    # ---- vocab tiling (reduction axis, innermost / "arbitrary").
    v_tile = min(V_pad, _round_up(max_v_tile, 128))
    n_vb = pl.cdiv(V_pad, v_tile)
    if n_vb * v_tile > V_pad:                 # re-pad only when V is tiled unevenly
        wf = jnp.pad(wf, ((0, n_vb * v_tile - V_pad), (0, 0)))

    # ---- activation padding (cheap jnp.pad glue).
    data_p = data.astype(jnp.int32)
    len_p = length.astype(jnp.float32)[:, None]
    if B_pad > B:
        data_p = jnp.pad(data_p, ((0, B_pad - B), (0, 0)))
        len_p = jnp.pad(len_p, ((0, B_pad - B), (0, 0)), constant_values=1.0)

    # TODO(synk): for very large vocabularies (V >~ 100K) a DMA row-gather of
    # the fused table kept in HBM beats the O(B*S*V) compare formulation.

    grid = (B_pad // bt, n_vb)
    out = pl.pallas_call(
        bow_kernel,
        out_shape=jax.ShapeDtypeStruct((B_pad, N_pad), jnp.float32),
        grid_spec=pltpu.PrefetchScalarGridSpec(
            num_scalar_prefetch=0,
            grid=grid,
            in_specs=[
                pl.BlockSpec((bt, S), lambda i, v: (i, 0)),          # token ids
                pl.BlockSpec((bt, 1), lambda i, v: (i, 0)),          # lengths
                _block_spec((v_tile, N_pad), lambda i, v: (v, 0),    # fused W
                            single_buffer=(n_vb == 1)),
                _block_spec((1, N_pad), lambda i, v: (0, 0),         # bias
                            single_buffer=True),
            ],
            out_specs=pl.BlockSpec((bt, N_pad), lambda i, v: (i, 0)),
            scratch_shapes=[pltpu.VMEM((bt, N_pad), jnp.float32)],   # logits acc
        ),
        compiler_params=pltpu.CompilerParams(
            dimension_semantics=("parallel", "arbitrary"),
            vmem_limit_bytes=_vmem_limit_bytes(),
        ),
    )(data_p, len_p, wf, bias2d)

    return out[:B, :n_cls]


def bag_of_words_ref(data, length, embed_w, linear_w, linear_b):
    out = embed_w[data]                                   # (B, S, D)
    out = jnp.sum(out, axis=1)                            # (B, D)
    out = out / length.astype(jnp.float32)[:, None]
    return out @ linear_w.T + linear_b


if __name__ == "__main__":
    key = jax.random.PRNGKey(0)
    k_data, k_len, k_emb, k_w, k_b = jax.random.split(key, 5)

    B, S = 16, 16        # batch, max sentence length
    V, D = 100, 32       # vocab size, embedding dim
    N_CLS = 20

    # deterministic "parameters"
    embed_w = jax.random.normal(k_emb, (V, D), dtype=jnp.float32) * 0.1
    embed_w = embed_w.at[0].set(0.0)                      # padding_idx=0 row is zero
    linear_w = jax.random.normal(k_w, (N_CLS, D), dtype=jnp.float32) * 0.1
    linear_b = jax.random.normal(k_b, (N_CLS,), dtype=jnp.float32) * 0.1

    # deterministic inputs: token ids (0 acts as padding), per-row lengths
    data = jax.random.randint(k_data, (B, S), 0, V, dtype=jnp.int32)
    length = jax.random.randint(k_len, (B,), 1, S + 1, dtype=jnp.int32)

    # weight-side fusion/padding done once (hoistable on an inference path)
    wf, bias2d, n_cls = prepare_bow_weights(embed_w, linear_w, linear_b)

    out = bag_of_words_forward(data, length, wf, bias2d, n_cls)
    out = jax.block_until_ready(out)

    ref = bag_of_words_ref(data, length, embed_w, linear_w, linear_b)
    # tolerance accounts for the W-fusion reassociation + bf16 fused-weight cast
    np.testing.assert_allclose(np.asarray(out), np.asarray(ref),
                               rtol=1e-2, atol=1e-2)
    print("KERNEL_OK")
</pallas_src>

<mosaic_0001>
module attributes {stable_mosaic.version = 11 : i64} {
  func.func @bow_kernel(%arg0: i32, %arg1: i32, %arg2: memref<8x16xi32, #tpu.memory_space<vmem>>, %arg3: memref<8x1xf32, #tpu.memory_space<vmem>>, %arg4: memref<128x128xbf16, #tpu.memory_space<vmem>>, %arg5: memref<1x128xf32, #tpu.memory_space<vmem>>, %arg6: memref<8x128xf32, #tpu.memory_space<vmem>>, %arg7: memref<8x128xf32, #tpu.memory_space<vmem>>) attributes {dimension_semantics = [#tpu.dimension_semantics<parallel>, #tpu.dimension_semantics<arbitrary>], iteration_bounds = array<i64: 2, 1>, scalar_prefetch = 0 : i64, scratch_operands = 1 : i64, tpu.core_type = #tpu.core_type<tc>, window_params = [{transform_indices = @transform_0, window_bounds = array<i64: 8, 16>}, {transform_indices = @transform_1, window_bounds = array<i64: 8, 1>}, {pipeline_mode = #tpu.pipeline_mode<synchronous>, transform_indices = @transform_2, window_bounds = array<i64: 128, 128>}, {pipeline_mode = #tpu.pipeline_mode<synchronous>, transform_indices = @transform_3, window_bounds = array<i64: 1, 128>}, {transform_indices = @transform_4, window_bounds = array<i64: 8, 128>}]} {
    %c0_i32 = arith.constant 0 : i32
    %0 = arith.cmpi eq, %arg1, %c0_i32 : i32
    %1 = arith.extui %0 : i1 to i32
    %c0_i32_0 = arith.constant 0 : i32
    %2 = arith.cmpi ne, %1, %c0_i32_0 : i32
    scf.if %2 {
      %cst_11 = arith.constant 0.000000e+00 : f32
      %98 = vector.broadcast %cst_11 : f32 to vector<8x128xf32>
      %c0_12 = arith.constant 0 : index
      %c0_13 = arith.constant 0 : index
      %99 = vector.load %arg7[%c0_12, %c0_13] : memref<8x128xf32, #tpu.memory_space<vmem>>, vector<8x128xf32>
      tpu.vector_store %arg7[%c0_12, %c0_13], %98 {strides = array<i32>} : memref<8x128xf32, #tpu.memory_space<vmem>>, vector<8x128xf32>,
    } else {
    }
    %c0 = arith.constant 0 : index
    %c0_1 = arith.constant 0 : index
    %3 = vector.load %arg2[%c0, %c0_1] : memref<8x16xi32, #tpu.memory_space<vmem>>, vector<8x16xi32>
    %4 = tpu.iota {dimensions = array<i32: 1>} : vector<8x128xi32>
    %c128_i32 = arith.constant 128 : i32
    %5 = arith.muli %arg1, %c128_i32 : i32
    %6 = vector.broadcast %5 : i32 to vector<8x128xi32>
    %7 = arith.addi %4, %6 : vector<8x128xi32>
    %c0_i32_2 = arith.constant 0 : i32
    %8 = vector.broadcast %c0_i32_2 : i32 to vector<8x128xi32>
    %9 = vector.extract_strided_slice %3 {offsets = [0, 0], sizes = [8, 1], strides = [1, 1]} : vector<8x16xi32> to vector<8x1xi32>
    %10 = vector.broadcast %9 : vector<8x1xi32> to vector<8x128xi32>
    %11 = arith.cmpi eq, %10, %7 : vector<8x128xi32>
    %12 = arith.extui %11 : vector<8x128xi1> to vector<8x128xi32>
    %13 = arith.addi %8, %12 : vector<8x128xi32>
    %14 = vector.extract_strided_slice %3 {offsets = [0, 1], sizes = [8, 1], strides = [1, 1]} : vector<8x16xi32> to vector<8x1xi32>
    %15 = vector.broadcast %14 : vector<8x1xi32> to vector<8x128xi32>
    %16 = arith.cmpi eq, %15, %7 : vector<8x128xi32>
    %17 = arith.extui %16 : vector<8x128xi1> to vector<8x128xi32>
    %18 = arith.addi %13, %17 : vector<8x128xi32>
    %19 = vector.extract_strided_slice %3 {offsets = [0, 2], sizes = [8, 1], strides = [1, 1]} : vector<8x16xi32> to vector<8x1xi32>
    %20 = vector.broadcast %19 : vector<8x1xi32> to vector<8x128xi32>
    %21 = arith.cmpi eq, %20, %7 : vector<8x128xi32>
    %22 = arith.extui %21 : vector<8x128xi1> to vector<8x128xi32>
    %23 = arith.addi %18, %22 : vector<8x128xi32>
    %24 = vector.extract_strided_slice %3 {offsets = [0, 3], sizes = [8, 1], strides = [1, 1]} : vector<8x16xi32> to vector<8x1xi32>
    %25 = vector.broadcast %24 : vector<8x1xi32> to vector<8x128xi32>
    %26 = arith.cmpi eq, %25, %7 : vector<8x128xi32>
    %27 = arith.extui %26 : vector<8x128xi1> to vector<8x128xi32>
    %28 = arith.addi %23, %27 : vector<8x128xi32>
    %29 = vector.extract_strided_slice %3 {offsets = [0, 4], sizes = [8, 1], strides = [1, 1]} : vector<8x16xi32> to vector<8x1xi32>
    %30 = vector.broadcast %29 : vector<8x1xi32> to vector<8x128xi32>
    %31 = arith.cmpi eq, %30, %7 : vector<8x128xi32>
    %32 = arith.extui %31 : vector<8x128xi1> to vector<8x128xi32>
    %33 = arith.addi %28, %32 : vector<8x128xi32>
    %34 = vector.extract_strided_slice %3 {offsets = [0, 5], sizes = [8, 1], strides = [1, 1]} : vector<8x16xi32> to vector<8x1xi32>
    %35 = vector.broadcast %34 : vector<8x1xi32> to vector<8x128xi32>
    %36 = arith.cmpi eq, %35, %7 : vector<8x128xi32>
    %37 = arith.extui %36 : vector<8x128xi1> to vector<8x128xi32>
    %38 = arith.addi %33, %37 : vector<8x128xi32>
    %39 = vector.extract_strided_slice %3 {offsets = [0, 6], sizes = [8, 1], strides = [1, 1]} : vector<8x16xi32> to vector<8x1xi32>
    %40 = vector.broadcast %39 : vector<8x1xi32> to vector<8x128xi32>
    %41 = arith.cmpi eq, %40, %7 : vector<8x128xi32>
    %42 = arith.extui %41 : vector<8x128xi1> to vector<8x128xi32>
    %43 = arith.addi %38, %42 : vector<8x128xi32>
    %44 = vector.extract_strided_slice %3 {offsets = [0, 7], sizes = [8, 1], strides = [1, 1]} : vector<8x16xi32> to vector<8x1xi32>
    %45 = vector.broadcast %44 : vector<8x1xi32> to vector<8x128xi32>
    %46 = arith.cmpi eq, %45, %7 : vector<8x128xi32>
    %47 = arith.extui %46 : vector<8x128xi1> to vector<8x128xi32>
    %48 = arith.addi %43, %47 : vector<8x128xi32>
    %49 = vector.extract_strided_slice %3 {offsets = [0, 8], sizes = [8, 1], strides = [1, 1]} : vector<8x16xi32> to vector<8x1xi32>
    %50 = vector.broadcast %49 : vector<8x1xi32> to vector<8x128xi32>
    %51 = arith.cmpi eq, %50, %7 : vector<8x128xi32>
    %52 = arith.extui %51 : vector<8x128xi1> to vector<8x128xi32>
    %53 = arith.addi %48, %52 : vector<8x128xi32>
    %54 = vector.extract_strided_slice %3 {offsets = [0, 9], sizes = [8, 1], strides = [1, 1]} : vector<8x16xi32> to vector<8x1xi32>
    %55 = vector.broadcast %54 : vector<8x1xi32> to vector<8x128xi32>
    %56 = arith.cmpi eq, %55, %7 : vector<8x128xi32>
    %57 = arith.extui %56 : vector<8x128xi1> to vector<8x128xi32>
    %58 = arith.addi %53, %57 : vector<8x128xi32>
    %59 = vector.extract_strided_slice %3 {offsets = [0, 10], sizes = [8, 1], strides = [1, 1]} : vector<8x16xi32> to vector<8x1xi32>
    %60 = vector.broadcast %59 : vector<8x1xi32> to vector<8x128xi32>
    %61 = arith.cmpi eq, %60, %7 : vector<8x128xi32>
    %62 = arith.extui %61 : vector<8x128xi1> to vector<8x128xi32>
    %63 = arith.addi %58, %62 : vector<8x128xi32>
    %64 = vector.extract_strided_slice %3 {offsets = [0, 11], sizes = [8, 1], strides = [1, 1]} : vector<8x16xi32> to vector<8x1xi32>
    %65 = vector.broadcast %64 : vector<8x1xi32> to vector<8x128xi32>
    %66 = arith.cmpi eq, %65, %7 : vector<8x128xi32>
    %67 = arith.extui %66 : vector<8x128xi1> to vector<8x128xi32>
    %68 = arith.addi %63, %67 : vector<8x128xi32>
    %69 = vector.extract_strided_slice %3 {offsets = [0, 12], sizes = [8, 1], strides = [1, 1]} : vector<8x16xi32> to vector<8x1xi32>
    %70 = vector.broadcast %69 : vector<8x1xi32> to vector<8x128xi32>
    %71 = arith.cmpi eq, %70, %7 : vector<8x128xi32>
    %72 = arith.extui %71 : vector<8x128xi1> to vector<8x128xi32>
    %73 = arith.addi %68, %72 : vector<8x128xi32>
    %74 = vector.extract_strided_slice %3 {offsets = [0, 13], sizes = [8, 1], strides = [1, 1]} : vector<8x16xi32> to vector<8x1xi32>
    %75 = vector.broadcast %74 : vector<8x1xi32> to vector<8x128xi32>
    %76 = arith.cmpi eq, %75, %7 : vector<8x128xi32>
    %77 = arith.extui %76 : vector<8x128xi1> to vector<8x128xi32>
    %78 = arith.addi %73, %77 : vector<8x128xi32>
    %79 = vector.extract_strided_slice %3 {offsets = [0, 14], sizes = [8, 1], strides = [1, 1]} : vector<8x16xi32> to vector<8x1xi32>
    %80 = vector.broadcast %79 : vector<8x1xi32> to vector<8x128xi32>
    %81 = arith.cmpi eq, %80, %7 : vector<8x128xi32>
    %82 = arith.extui %81 : vector<8x128xi1> to vector<8x128xi32>
    %83 = arith.addi %78, %82 : vector<8x128xi32>
    %84 = vector.extract_strided_slice %3 {offsets = [0, 15], sizes = [8, 1], strides = [1, 1]} : vector<8x16xi32> to vector<8x1xi32>
    %85 = vector.broadcast %84 : vector<8x1xi32> to vector<8x128xi32>
    %86 = arith.cmpi eq, %85, %7 : vector<8x128xi32>
    %87 = arith.extui %86 : vector<8x128xi1> to vector<8x128xi32>
    %88 = arith.addi %83, %87 : vector<8x128xi32>
    %c0_3 = arith.constant 0 : index
    %c0_4 = arith.constant 0 : index
    %89 = vector.load %arg7[%c0_3, %c0_4] : memref<8x128xf32, #tpu.memory_space<vmem>>, vector<8x128xf32>
    %90 = arith.sitofp %88 : vector<8x128xi32> to vector<8x128xbf16>
    %c0_5 = arith.constant 0 : index
    %c0_6 = arith.constant 0 : index
    %91 = vector.load %arg4[%c0_5, %c0_6] : memref<128x128xbf16, #tpu.memory_space<vmem>>, vector<128x128xbf16>
    %cst = arith.constant dense<0.000000e+00> : vector<8x128xf32>
    %92 = tpu.matmul %90, %91, %cst {dimension_numbers = #tpu.dot_dimension_numbers<[1], [0], [0], [1], [0, 0, 1, 1], [], []>} : vector<8x128xbf16>, vector<128x128xbf16>, vector<8x128xf32> -> vector<8x128xf32>
    %93 = arith.addf %89, %92 : vector<8x128xf32>
    %c0_7 = arith.constant 0 : index
    %c0_8 = arith.constant 0 : index
    %94 = vector.load %arg7[%c0_7, %c0_8] : memref<8x128xf32, #tpu.memory_space<vmem>>, vector<8x128xf32>
    tpu.vector_store %arg7[%c0_7, %c0_8], %93 {strides = array<i32>} : memref<8x128xf32, #tpu.memory_space<vmem>>, vector<8x128xf32>,
    %c0_i32_9 = arith.constant 0 : i32
    %95 = arith.cmpi eq, %arg1, %c0_i32_9 : i32
    %96 = arith.extui %95 : i1 to i32
    %c0_i32_10 = arith.constant 0 : i32
    %97 = arith.cmpi ne, %96, %c0_i32_10 : i32
    scf.if %97 {
      %c0_11 = arith.constant 0 : index
      %c0_12 = arith.constant 0 : index
      %98 = vector.load %arg3[%c0_11, %c0_12] : memref<8x1xf32, #tpu.memory_space<vmem>>, vector<8x1xf32>
      %99 = tpu.reciprocal %98 : vector<8x1xf32> -> vector<8x1xf32>
      %c0_13 = arith.constant 0 : index
      %c0_14 = arith.constant 0 : index
      %100 = vector.load %arg7[%c0_13, %c0_14] : memref<8x128xf32, #tpu.memory_space<vmem>>, vector<8x128xf32>
      %101 = vector.broadcast %99 : vector<8x1xf32> to vector<8x128xf32>
      %102 = arith.mulf %100, %101 : vector<8x128xf32>
      %c0_15 = arith.constant 0 : index
      %c0_16 = arith.constant 0 : index
      %103 = vector.load %arg5[%c0_15, %c0_16] : memref<1x128xf32, #tpu.memory_space<vmem>>, vector<1x128xf32>
      %104 = vector.broadcast %103 : vector<1x128xf32> to vector<8x128xf32>
      %105 = arith.addf %102, %104 : vector<8x128xf32>
      %c0_17 = arith.constant 0 : index
      %c0_18 = arith.constant 0 : index
      %106 = vector.load %arg6[%c0_17, %c0_18] : memref<8x128xf32, #tpu.memory_space<vmem>>, vector<8x128xf32>
      tpu.vector_store %arg6[%c0_17, %c0_18], %105 {strides = array<i32>} : memref<8x128xf32, #tpu.memory_space<vmem>>, vector<8x128xf32>,
    } else {
    }
    return
  }
  func.func @transform_0(%arg0: i32, %arg1: i32) -> (i32, i32) {
    %c0_i32 = arith.constant 0 : i32
    %c0_i32_0 = arith.constant 0 : i32
    return %arg0, %c0_i32 : i32, i32
  }
  func.func @transform_1(%arg0: i32, %arg1: i32) -> (i32, i32) {
    %c0_i32 = arith.constant 0 : i32
    %c0_i32_0 = arith.constant 0 : i32
    return %arg0, %c0_i32 : i32, i32
  }
  func.func @transform_2(%arg0: i32, %arg1: i32) -> (i32, i32) {
    %c0_i32 = arith.constant 0 : i32
    %c0_i32_0 = arith.constant 0 : i32
    return %arg1, %c0_i32 : i32, i32
  }
  func.func @transform_3(%arg0: i32, %arg1: i32) -> (i32, i32) {
    %c0_i32 = arith.constant 0 : i32
    %c0_i32_0 = arith.constant 0 : i32
    %c0_i32_1 = arith.constant 0 : i32
    return %c0_i32, %c0_i32_0 : i32, i32
  }
  func.func @transform_4(%arg0: i32, %arg1: i32) -> (i32, i32) {
    %c0_i32 = arith.constant 0 : i32
    %c0_i32_0 = arith.constant 0 : i32
    return %arg0, %c0_i32 : i32, i32
  }
}

</mosaic_0001>

<llo_original>
// kernel: tpu_custom_call.1
$region0: #{tpu_custom_call.1}
  #allocation0 [shape = 'u32[]', space=smem, size = 0x4, offset = 0x4, fixed_abs, tag = 'smem constant byte address 0x4 - core index']
  #allocation1 [shape = 'u32[72,128]{1,0:T(1,128)}', space=vmem, size = 0x9000, scoped, tag = 'internal scratch']
  #allocation2 [shape = 'f32[8,128]{1,0:T(8,128)}', space=vmem, size = 0x1000, scoped, tag = 'scratch operand']
  %s0 = inlined_call_operand.vmem [shape: s32[16,16], index: 0, kind: input, shape index: {}]
  %s1 = inlined_call_operand.vmem [shape: f32[16,1], index: 1, kind: input, shape index: {}]
  %s2 = inlined_call_operand.hbm [shape: bf16[128,128], index: 2, kind: input, shape index: {}]
  %s3 = inlined_call_operand.vmem [shape: f32[1,128], index: 3, kind: input, shape index: {}]
  %s4 = inlined_call_operand.hbm [shape: f32[16,128], index: 4, kind: output, shape index: {}]
  %s5 = sld [smem:[#allocation0]]
  $region61: #{tpu_custom_call.1} parent=0
    _
  %s7 = ssub.s32 1, %s5
  %s8 = scalar_select 0, %s7, %s5
  $region1: #{tpu_custom_call.1} parent=0
    #allocation3 [shape = 'u8[32768]{0}', space=vmem, size = 0x8000, scoped, tag = 'input window, operand 2, single buffered']
    #allocation4 [shape = 's32[2]{0}', space=sflag, size = 0x8, scoped, tag = 'scoped memory for tpu_custom_call.1']
    #allocation5 [shape = 's32[2]{0}', space=sflag, size = 0x8, scoped, tag = 'scoped memory for tpu_custom_call.1']
    #allocation6 [shape = 'u8[8192]{0}', space=vmem, size = 0x2000, scoped, tag = 'output window, operand 0']
    %9 = vsyncpa [#allocation4], 0
    %10 = vsyncpa [#allocation5], 0
    %s11 = scalar_lea.sflag [#allocation5], 1
    %12 = vsyncpa %s11, 0
    loop: start=0, step=1, limit=4
    $region2: #{tpu_custom_call.1} parent=1 // loop_pre_header
      _
    $region3: #{tpu_custom_call.1} parent=1 // loop_header
      %s14 = sphi 0, %s18
      %p15 = scmp.ge.s32.totalorder %s14, 4
      %s21 = sphi 0, %s33
      %s22 = sphi 0, %s29
      %s23 = sphi 0, %s21
      %s24 = sphi 0, %s22
      %s25 = sphi 0, %s23
      %s26 = sphi 0, %s24
      %s36 = sphi 0, %s38
      %s39 = sphi 0, %s36
      %s40 = sphi 0, %s39
      %s56 = sphi 0, %s40
      %s62 = sphi 0, %s64
      %s65 = sphi 0, %s62
      %s66 = sphi 0, %s65
      %s82 = sphi 0, %s66
      %s88 = sphi 0, %s90
      %s91 = sphi 0, %s88
      %s92 = sphi 0, %s91
      %s108 = sphi 0, %s92
      %s112 = sphi 0, %s112
      %s114 = sphi 0, %s112
      %s115 = sphi 0, %s114
      %s129 = sphi 0, %s115
      %s135 = sphi 0, %s137
      %s138 = sphi 0, %s135
      %s139 = sphi 0, %s138
      %s155 = sphi 0, %s139
    $region4: #{tpu_custom_call.1} parent=1 // loop_header_branch
      %17 = sbr.rel (%p15) target = $region8
    $region5: #{tpu_custom_call.1} parent=1 // loop_body
      %s19 = ssub.s32 %s14, 1
      %s20 = ssub.s32 %s14, 2
      %s27 = sadd.s32 1, %s22
      %p28 = scmp.ge.s32.totalorder %s27, 1
      %s29 = scalar_select %p28, 0, %s27
      %s30 = sadd.s32 1, %s21
      %s31 = scalar_select %p28, %s30, %s21
      %p32 = scmp.ge.s32.totalorder %s31, 2
      %s33 = scalar_select %p32, 0, %s31
      %s34 = ssub.s32 %s21, %s33
      %p35 = scmp.eq.s32.totalorder %s34, 0
      %s37 = sadd.s32 %s36, 1
      %s38 = scalar_select %p35, %s36, %s37
      %p41 = pneg %p35
      %p42 = scmp.eq.s32.totalorder %s14, 1
      %p43 = por %p41, %p42
      %p44 = scmp.ne.s32.totalorder %s36, %s39
      %p45 = scmp.eq.s32.totalorder %s14, 0
      %p46 = por %p44, %p45
      %p47 = scmp.ne.s32.totalorder %s36, %s39
      %p48 = scmp.eq.s32.totalorder %s19, 1
      %p49 = por %p47, %p48
      %p50 = scmp.ne.s32.totalorder %s39, %s40
      %p51 = scmp.eq.s32.totalorder %s19, 0
      %p52 = por %p50, %p51
      %p53 = scmp.ne.s32.totalorder %s39, %s40
      %p54 = scmp.eq.s32.totalorder %s20, 1
      %p55 = por %p53, %p54
      %p57 = scmp.ne.s32.totalorder %s40, %s56
      %p58 = scmp.eq.s32.totalorder %s20, 0
      %p59 = por %p57, %p58
      %s60 = ssub.s32 %s21, %s33
      %p61 = scmp.eq.s32.totalorder %s60, 0
      %s63 = sadd.s32 %s62, 1
      %s64 = scalar_select %p61, %s62, %s63
      %p67 = pneg %p61
      %p68 = scmp.eq.s32.totalorder %s14, 1
      %p69 = por %p67, %p68
      %p70 = scmp.ne.s32.totalorder %s62, %s65
      %p71 = scmp.eq.s32.totalorder %s14, 0
      %p72 = por %p70, %p71
      %p73 = scmp.ne.s32.totalorder %s62, %s65
      %p74 = scmp.eq.s32.totalorder %s19, 1
      %p75 = por %p73, %p74
      %p76 = scmp.ne.s32.totalorder %s65, %s66
      %p77 = scmp.eq.s32.totalorder %s19, 0
      %p78 = por %p76, %p77
      %p79 = scmp.ne.s32.totalorder %s65, %s66
      %p80 = scmp.eq.s32.totalorder %s20, 1
      %p81 = por %p79, %p80
      %p83 = scmp.ne.s32.totalorder %s66, %s82
      %p84 = scmp.eq.s32.totalorder %s20, 0
      %p85 = por %p83, %p84
      %s86 = ssub.s32 %s22, %s29
      %p87 = scmp.eq.s32.totalorder %s86, 0
      %s89 = sadd.s32 %s88, 1
      %s90 = scalar_select %p87, %s88, %s89
      %p93 = pneg %p87
      %p94 = scmp.eq.s32.totalorder %s14, 1
      %p95 = por %p93, %p94
      %p96 = scmp.ne.s32.totalorder %s88, %s91
      %p97 = scmp.eq.s32.totalorder %s14, 0
      %p98 = por %p96, %p97
      %p99 = scmp.ne.s32.totalorder %s88, %s91
      %p100 = scmp.eq.s32.totalorder %s19, 1
      %p101 = por %p99, %p100
      %p102 = scmp.ne.s32.totalorder %s91, %s92
      %p103 = scmp.eq.s32.totalorder %s19, 0
      %p104 = por %p102, %p103
      %p105 = scmp.ne.s32.totalorder %s91, %s92
      %p106 = scmp.eq.s32.totalorder %s20, 1
      %p107 = por %p105, %p106
      %p109 = scmp.ne.s32.totalorder %s92, %s108
      %p110 = scmp.eq.s32.totalorder %s20, 0
      %p111 = por %p109, %p110
      %s113 = sadd.s32 %s112, 1
      %p116 = scmp.eq.s32.totalorder %s14, 1
      %p117 = scmp.ne.s32.totalorder %s112, %s114
      %p118 = scmp.eq.s32.totalorder %s14, 0
      %p119 = por %p117, %p118
      %p120 = scmp.ne.s32.totalorder %s112, %s114
      %p121 = scmp.eq.s32.totalorder %s19, 1
      %p122 = por %p120, %p121
      %p123 = scmp.ne.s32.totalorder %s114, %s115
      %p124 = scmp.eq.s32.totalorder %s19, 0
      %p125 = por %p123, %p124
      %p126 = scmp.ne.s32.totalorder %s114, %s115
      %p127 = scmp.eq.s32.totalorder %s20, 1
      %p128 = por %p126, %p127
      %p130 = scmp.ne.s32.totalorder %s115, %s129
      %p131 = scmp.eq.s32.totalorder %s20, 0
      %p132 = por %p130, %p131
      %s133 = ssub.s32 %s21, %s33
      %p134 = scmp.eq.s32.totalorder %s133, 0
      %s136 = sadd.s32 %s135, 1
      %s137 = scalar_select %p134, %s135, %s136
      %p140 = pneg %p134
      %p141 = scmp.eq.s32.totalorder %s14, 1
      %p142 = por %p140, %p141
      %p143 = scmp.ne.s32.totalorder %s135, %s138
      %p144 = scmp.eq.s32.totalorder %s14, 0
      %p145 = por %p143, %p144
      %p146 = scmp.ne.s32.totalorder %s135, %s138
      %p147 = scmp.eq.s32.totalorder %s19, 1
      %p148 = por %p146, %p147
      %p149 = scmp.ne.s32.totalorder %s138, %s139
      %p150 = scmp.eq.s32.totalorder %s19, 0
      %p151 = por %p149, %p150
      %p152 = scmp.ne.s32.totalorder %s138, %s139
      %p153 = scmp.eq.s32.totalorder %s20, 1
      %p154 = por %p152, %p153
      %p156 = scmp.ne.s32.totalorder %s139, %s155
      %p157 = scmp.eq.s32.totalorder %s20, 0
      %p158 = por %p156, %p157
      %p159 = scmp.le.s32.totalorder 1, %s14
      %p160 = scmp.lt.s32.totalorder %s14, 3
      %p161 = pnand %p159, %p160
      %p162 = pneg %p161
      // Predicated region
      $region9: #{tpu_custom_call.1} parent=5 // pred_check
        _
      $region10: #{tpu_custom_call.1} parent=5 // pred_check_branch
        %164 = sbr.rel (%p161) target = $region12
      $region11: #{tpu_custom_call.1} parent=5 // pred_region
        %s165 = ssub.s32 %s14, 1
        // Predicated region
        $region13: #{tpu_custom_call.1} parent=11 // pred_check
          %p166 = pneg %p104
        $region14: #{tpu_custom_call.1} parent=11 // pred_check_branch
          %168 = sbr.rel (%p166) target = $region16
        $region15: #{tpu_custom_call.1} parent=11 // pred_region
          %s169 = smul.u32 16, %s24
          %171 = vsyncadd [#allocation4], 0
          %s172 = smul.addr %s169, 4
          %s173 = scalar_lea.hbm %s2, %s172
          %s174 = sshll.u32 %s173, 4
          %s175 = int_to_ptr.hbm [resolvable:$true] %s174
          %s176 = sshll.u32 [#allocation3], 4
          %s177 = int_to_ptr.vmem [resolvable:$true] %s176
          %182 = dma.hbm_to_vmem [thread:$0]  %s175, 1024, %s177, [#allocation4], 64, 64, 4
        $region16: #{tpu_custom_call.1} parent=11 // pred_fallthru
          _
        // Predicated region
        $region17: #{tpu_custom_call.1} parent=11 // pred_check
          %p183 = pneg %p125
        $region18: #{tpu_custom_call.1} parent=11 // pred_check_branch
          %185 = sbr.rel (%p183) target = $region20
        $region19: #{tpu_custom_call.1} parent=11 // pred_region
          _
        $region20: #{tpu_custom_call.1} parent=11 // pred_fallthru
          _
      $region12: #{tpu_custom_call.1} parent=5 // pred_fallthru
        _
      %p186 = scmp.lt.s32.totalorder %s14, 2
      // Predicated region
      $region21: #{tpu_custom_call.1} parent=5 // pred_check
        %p187 = pneg %p186
      $region22: #{tpu_custom_call.1} parent=5 // pred_check_branch
        %189 = sbr.rel (%p187) target = $region24
      $region23: #{tpu_custom_call.1} parent=5 // pred_region
        // Predicated region
        $region25: #{tpu_custom_call.1} parent=23 // pred_check
          %p190 = pneg %p46
        $region26: #{tpu_custom_call.1} parent=23 // pred_check_branch
          %192 = sbr.rel (%p190) target = $region28
        $region27: #{tpu_custom_call.1} parent=23 // pred_region
          %p193 = scmp.lt.s32.totalorder %s21, 1
          %s194 = scalar_select %p193, %s21, 1
          %s195 = smul.addr %s194, 8
          %s196 = scalar_lea.vmem %s0, %s195
        $region28: #{tpu_custom_call.1} parent=23 // pred_fallthru
          _
        // Predicated region
        $region29: #{tpu_custom_call.1} parent=23 // pred_check
          %p197 = pneg %p72
        $region30: #{tpu_custom_call.1} parent=23 // pred_check_branch
          %199 = sbr.rel (%p197) target = $region32
        $region31: #{tpu_custom_call.1} parent=23 // pred_region
          %p200 = scmp.lt.s32.totalorder %s21, 1
          %s201 = scalar_select %p200, %s21, 1
          %s202 = smul.addr %s201, 8
          %s203 = scalar_lea.vmem %s1, %s202
        $region32: #{tpu_custom_call.1} parent=23 // pred_fallthru
          _
      $region24: #{tpu_custom_call.1} parent=5 // pred_fallthru
        _
      %p204 = scmp.le.s32.totalorder 1, %s14
      %p205 = scmp.lt.s32.totalorder %s14, 3
      %p206 = pnand %p204, %p205
      %p207 = pneg %p206
      // Predicated region
      $region33: #{tpu_custom_call.1} parent=5 // pred_check
        _
      $region34: #{tpu_custom_call.1} parent=5 // pred_check_branch
        %209 = sbr.rel (%p206) target = $region36
      $region35: #{tpu_custom_call.1} parent=5 // pred_region
        %s210 = ssub.s32 %s14, 1
        // Predicated region
        $region37: #{tpu_custom_call.1} parent=35 // pred_check
          %p211 = pneg %p104
        $region38: #{tpu_custom_call.1} parent=35 // pred_check_branch
          %213 = sbr.rel (%p211) target = $region40
        $region39: #{tpu_custom_call.1} parent=35 // pred_region
          %215 = dma.done [#allocation4], 1024
        $region40: #{tpu_custom_call.1} parent=35 // pred_fallthru
          _
        %p216 = scmp.lt.s32.totalorder %s23, 1
        %s217 = scalar_select %p216, %s23, 1
        %s218 = smul.addr %s217, 8
        %s219 = scalar_lea.vmem %s0, %s218
        %p220 = pneg %p52
        %p221 = pneg %p49
        %p222 = scmp.lt.s32.totalorder %s23, 1
        %s223 = scalar_select %p222, %s23, 1
        %s224 = smul.addr %s223, 8
        %s225 = scalar_lea.vmem %s1, %s224
        %p226 = pneg %p78
        %p227 = pneg %p75
        %p228 = pneg %p104
        %p229 = pneg %p101
        %p230 = pneg %p125
        %p231 = pneg %p122
        %p232 = pneg %p151
        %p233 = pneg %p148
        %s234 = sand.u32 %s138, 1
        %s235 = scalar_lea.sflag [#allocation5], %s234
        %s236 = sand.u32 %s138, 1
        %s237 = smul.addr %s236, 8
        %s238 = scalar_lea.vmem [#allocation6], %s237
        %p239 = scmp.lt.s32.totalorder %s23, 1
        %s240 = scalar_select %p239, %s23, 1
        %s241 = smul.addr %s240, 8
        %s242 = scalar_lea.vmem %s0, %s241
        %p243 = scmp.lt.s32.totalorder %s23, 1
        %s244 = scalar_select %p243, %s23, 1
        %s245 = smul.addr %s244, 8
        %s246 = scalar_lea.vmem %s1, %s245
        %s247 = smul.u32 16, %s24
        %p248 = scmp.eq.s32.totalorder %s24, 0
        // Predicated region
        $region41: #{tpu_custom_call.1} parent=35 // pred_check
          %p249 = pneg %p248
        $region42: #{tpu_custom_call.1} parent=35 // pred_check_branch
          %251 = sbr.rel (%p249) target = $region44
        $region43: #{tpu_custom_call.1} parent=35 // pred_region
          %252 = vst [vmem:[#allocation2] sm:$0xff] 0.0
        $region44: #{tpu_custom_call.1} parent=35 // pred_fallthru
          _
        %v253 = vld [vmem:[%s242] sm:$0xff]
        %v254 = vlaneseq
        %v255 = vand.u32 %v254, 127
        %s256 = smul.u32 %s24, 128
        %v257 = vstv %s256
        %v258 = vadd.s32 %v255, %v257
        %259 = vset.pattern.permute.xlu0 0
        %260 = vperm.xlu0 %259, %v253
        %v261 = vpop.permute.xlu0 %260
        %vm262 = vcmp.eq.s32.totalorder %v261, %v258
        %v263 = vsel %vm262, 1, 0
        %264 = vset.pattern.permute.xlu0 1
        %265 = vperm.xlu0 %264, %v253
        %v266 = vpop.permute.xlu0 %265
        %vm267 = vcmp.eq.s32.totalorder %v266, %v258
        %v268 = vsel %vm267, 1, 0
        %v269 = vadd.s32 %v263, %v268
        %270 = vset.pattern.permute.xlu0 2
        %271 = vperm.xlu0 %270, %v253
        %v272 = vpop.permute.xlu0 %271
        %vm273 = vcmp.eq.s32.totalorder %v272, %v258
        %v274 = vsel %vm273, 1, 0
        %v275 = vadd.s32 %v269, %v274
        %276 = vset.pattern.permute.xlu0 3
        %277 = vperm.xlu0 %276, %v253
        %v278 = vpop.permute.xlu0 %277
        %vm279 = vcmp.eq.s32.totalorder %v278, %v258
        %v280 = vsel %vm279, 1, 0
        %v281 = vadd.s32 %v275, %v280
        %282 = vset.pattern.permute.xlu0 4
        %283 = vperm.xlu0 %282, %v253
        %v284 = vpop.permute.xlu0 %283
        %vm285 = vcmp.eq.s32.totalorder %v284, %v258
        %v286 = vsel %vm285, 1, 0
        %v287 = vadd.s32 %v281, %v286
        %288 = vset.pattern.permute.xlu0 5
        %289 = vperm.xlu0 %288, %v253
        %v290 = vpop.permute.xlu0 %289
        %vm291 = vcmp.eq.s32.totalorder %v290, %v258
        %v292 = vsel %vm291, 1, 0
        %v293 = vadd.s32 %v287, %v292
        %294 = vset.pattern.permute.xlu0 6
        %295 = vperm.xlu0 %294, %v253
        %v296 = vpop.permute.xlu0 %295
        %vm297 = vcmp.eq.s32.totalorder %v296, %v258
        %v298 = vsel %vm297, 1, 0
        %v299 = vadd.s32 %v293, %v298
        %300 = vset.pattern.permute.xlu0 7
        %301 = vperm.xlu0 %300, %v253
        %v302 = vpop.permute.xlu0 %301
        %vm303 = vcmp.eq.s32.totalorder %v302, %v258
        %v304 = vsel %vm303, 1, 0
        %v305 = vadd.s32 %v299, %v304
        %306 = vset.pattern.permute.xlu0 8
        %307 = vperm.xlu0 %306, %v253
        %v308 = vpop.permute.xlu0 %307
        %vm309 = vcmp.eq.s32.totalorder %v308, %v258
        %v310 = vsel %vm309, 1, 0
        %v311 = vadd.s32 %v305, %v310
        %312 = vset.pattern.permute.xlu0 9
        %313 = vperm.xlu0 %312, %v253
        %v314 = vpop.permute.xlu0 %313
        %vm315 = vcmp.eq.s32.totalorder %v314, %v258
        %v316 = vsel %vm315, 1, 0
        %v317 = vadd.s32 %v311, %v316
        %318 = vset.pattern.permute.xlu0 10
        %319 = vperm.xlu0 %318, %v253
        %v320 = vpop.permute.xlu0 %319
        %vm321 = vcmp.eq.s32.totalorder %v320, %v258
        %v322 = vsel %vm321, 1, 0
        %v323 = vadd.s32 %v317, %v322
        %324 = vset.pattern.permute.xlu0 11
        %325 = vperm.xlu0 %324, %v253
        %v326 = vpop.permute.xlu0 %325
        %vm327 = vcmp.eq.s32.totalorder %v326, %v258
        %v328 = vsel %vm327, 1, 0
        %v329 = vadd.s32 %v323, %v328
        %330 = vset.pattern.permute.xlu0 12
        %331 = vperm.xlu0 %330, %v253
        %v332 = vpop.permute.xlu0 %331
        %vm333 = vcmp.eq.s32.totalorder %v332, %v258
        %v334 = vsel %vm333, 1, 0
        %v335 = vadd.s32 %v329, %v334
        %336 = vset.pattern.permute.xlu0 13
        %337 = vperm.xlu0 %336, %v253
        %v338 = vpop.permute.xlu0 %337
        %vm339 = vcmp.eq.s32.totalorder %v338, %v258
        %v340 = vsel %vm339, 1, 0
        %v341 = vadd.s32 %v335, %v340
        %342 = vset.pattern.permute.xlu0 14
        %343 = vperm.xlu0 %342, %v253
        %v344 = vpop.permute.xlu0 %343
        %vm345 = vcmp.eq.s32.totalorder %v344, %v258
        %v346 = vsel %vm345, 1, 0
        %v347 = vadd.s32 %v341, %v346
        %348 = vset.pattern.permute.xlu0 15
        %349 = vperm.xlu0 %348, %v253
        %v350 = vpop.permute.xlu0 %349
        %vm351 = vcmp.eq.s32.totalorder %v350, %v258
        %v352 = vsel %vm351, 1, 0
        %v353 = vadd.s32 %v347, %v352
        %v354 = vld [vmem:[#allocation2] sm:$0xff]
        %v355 = vcvt.s32.f32 %v353
        %v356 = vpack.c.bf16 %v355, %v355
        %v357 = vld [vmem:[#allocation3] sm:$0xf]
        %v358 = vld [vmem:[#allocation3 + $0x4] sm:$0xf]
        %v359 = vld [vmem:[#allocation3 + $0x8] sm:$0xf]
        %v360 = vld [vmem:[#allocation3 + $0xc] sm:$0xf]
        %v361 = vld [vmem:[#allocation3 + $0x10] sm:$0xf]
        %v362 = vld [vmem:[#allocation3 + $0x14] sm:$0xf]
        %v363 = vld [vmem:[#allocation3 + $0x18] sm:$0xf]
        %v364 = vld [vmem:[#allocation3 + $0x1c] sm:$0xf]
        %v365 = vld [vmem:[#allocation3 + $0x20] sm:$0xf]
        %v366 = vld [vmem:[#allocation3 + $0x24] sm:$0xf]
        %v367 = vld [vmem:[#allocation3 + $0x28] sm:$0xf]
        %v368 = vld [vmem:[#allocation3 + $0x2c] sm:$0xf]
        %v369 = vld [vmem:[#allocation3 + $0x30] sm:$0xf]
        %v370 = vld [vmem:[#allocation3 + $0x34] sm:$0xf]
        %v371 = vld [vmem:[#allocation3 + $0x38] sm:$0xf]
        %v372 = vld [vmem:[#allocation3 + $0x3c] sm:$0xf]
        %v389 = vunpack.c.l.b16 %v357
        %v390 = vunpack.c.l.b16 %v358
        %v391 = vunpack.c.l.b16 %v359
        %v392 = vunpack.c.l.b16 %v360
        %v393 = vunpack.c.l.b16 %v361
        %v394 = vunpack.c.l.b16 %v362
        %v395 = vunpack.c.l.b16 %v363
        %v396 = vunpack.c.l.b16 %v364
        %v397 = vunpack.c.l.b16 %v365
        %v398 = vunpack.c.l.b16 %v366
        %v399 = vunpack.c.l.b16 %v367
        %v400 = vunpack.c.l.b16 %v368
        %v401 = vunpack.c.l.b16 %v369
        %v402 = vunpack.c.l.b16 %v370
        %v403 = vunpack.c.l.b16 %v371
        %v404 = vunpack.c.l.b16 %v372
        %v405 = vpack.c.b16 %v390, %v389
        %v406 = vpack.c.b16 %v392, %v391
        %v407 = vpack.c.b16 %v394, %v393
        %v408 = vpack.c.b16 %v396, %v395
        %v409 = vpack.c.b16 %v398, %v397
        %v410 = vpack.c.b16 %v400, %v399
        %v411 = vpack.c.b16 %v402, %v401
        %v412 = vpack.c.b16 %v404, %v403
        %421 = vmatpush.bf16.msra.mxu0 %v412
        %422 = vmatpush.bf16.msra.mxu0 %v411
        %423 = vmatpush.bf16.msra.mxu0 %v410
        %424 = vmatpush.bf16.msra.mxu0 %v409
        %425 = vmatpush.bf16.msra.mxu0 %v408
        %426 = vmatpush.bf16.msra.mxu0 %v407
        %427 = vmatpush.bf16.msra.mxu0 %v406
        %428 = vmatpush.bf16.msra.mxu0 %v405
        %429 = vmatmul.bf16.gmra.mxu0 %v356
        %v430 = vpop.f32.mrf.mxu0
        %v431 = vadd.f32 0.0, %v430
        %v432 = vpop.f32.mrf.mxu0
        %433 = vdwg.mxu0
        %v434 = vadd.f32 %v354, %v431
        %435 = vst [vmem:[#allocation2] sm:$0xff] %v434
        // Predicated region
        $region45: #{tpu_custom_call.1} parent=35 // pred_check
          %p436 = pneg %p248
        $region46: #{tpu_custom_call.1} parent=35 // pred_check_branch
          %438 = sbr.rel (%p436) target = $region48
        $region47: #{tpu_custom_call.1} parent=35 // pred_region
          %v439 = vld [vmem:[%s246] sm:$0xff]
          %v440 = vrcp.pop %v439
          %v441 = vmul.f32 %v439, %v440
          %v442 = vsub.f32 1.0, %v441
          %v443 = vmul.f32 %v440, %v442
          %v444 = vadd.f32 %v440, %v443
          %vm445 = vweird.f32 %v439
          %vm446 = vweird.f32 %v440
          %vm447 = vmor %vm445, %vm446
          %v448 = vsel %vm447, %v440, %v444
          %v449 = vand.u32 2147483647, %v439
          %vm450 = vcmp.eq.f32.partialorder %v449, 8.507059e+37
          %v451 = vand.u32 %v439, 2147483648
          %v452 = vor.u32 1.1754944e-38, %v451
          %v453 = vsel %vm450, %v452, %v448
          %v454 = vld [vmem:[#allocation2] sm:$0xff]
          %456 = vset.pattern.permute.xlu0 0
          %457 = vperm.xlu0 %456, %v453
          %v458 = vpop.permute.xlu0 %457
          %v460 = vmul.f32 %v454, %v458
          %v461 = vld [vmem:[%s3] sm:$0x1]
          %v463 = vperm.slane %v461, 0
          %v465 = vadd.f32 %v460, %v463
          %466 = vst [vmem:[%s238] sm:$0xff] %v465
        $region48: #{tpu_custom_call.1} parent=35 // pred_fallthru
          _
        %s467 = sand.u32 %s138, 1
        %s468 = scalar_lea.sflag [#allocation5], %s467
        %s469 = sand.u32 %s138, 1
        %s470 = smul.addr %s469, 8
        %s471 = scalar_lea.vmem [#allocation6], %s470
        // Predicated region
        $region49: #{tpu_custom_call.1} parent=35 // pred_check
          %p472 = pneg %p148
        $region50: #{tpu_custom_call.1} parent=35 // pred_check_branch
          %474 = sbr.rel (%p472) target = $region52
        $region51: #{tpu_custom_call.1} parent=35 // pred_region
          %476 = vsyncadd %s468, 0
          %s477 = smul.addr %s23, 8
          %s478 = scalar_lea.hbm %s4, %s477
          %s480 = sshll.u32 %s471, 4
          %s481 = int_to_ptr.vmem [resolvable:$true] %s480
          %s482 = sshll.u32 %s478, 4
          %s483 = int_to_ptr.hbm [resolvable:$true] %s482
          %485 = dma.vmem_to_hbm [thread:$0]  %s481, 128, %s483, %s468
        $region52: #{tpu_custom_call.1} parent=35 // pred_fallthru
          _
      $region36: #{tpu_custom_call.1} parent=5 // pred_fallthru
        _
      %p486 = scmp.le.s32.totalorder 2, %s14
      // Predicated region
      $region53: #{tpu_custom_call.1} parent=5 // pred_check
        %p487 = pneg %p486
      $region54: #{tpu_custom_call.1} parent=5 // pred_check_branch
        %489 = sbr.rel (%p487) target = $region56
      $region55: #{tpu_custom_call.1} parent=5 // pred_region
        %s490 = ssub.s32 %s14, 2
        // Predicated region
        $region57: #{tpu_custom_call.1} parent=55 // pred_check
          %p491 = pneg %p154
        $region58: #{tpu_custom_call.1} parent=55 // pred_check_branch
          %493 = sbr.rel (%p491) target = $region60
        $region59: #{tpu_custom_call.1} parent=55 // pred_region
          %s494 = sand.u32 %s139, 1
          %s495 = scalar_lea.sflag [#allocation5], %s494
          %s496 = sand.u32 %s139, 1
          %s497 = smul.addr %s496, 8
          %s498 = scalar_lea.vmem [#allocation6], %s497
          %500 = dma.done %s495, 128
        $region60: #{tpu_custom_call.1} parent=55 // pred_fallthru
          _
      $region56: #{tpu_custom_call.1} parent=5 // pred_fallthru
        _
    $region6: #{tpu_custom_call.1} parent=1 // loop_footer
      %s18 = sadd.s32 1, %s14
    $region7: #{tpu_custom_call.1} parent=1 // loop_footer_branch
      %13 = sbr.rel target = $region3
    $region8: #{tpu_custom_call.1} parent=1 // loop_exit
      _
    %501 = vsyncpa [#allocation4], 1
    %s502 = scalar_lea.sflag [#allocation4], 1
    %503 = vsyncpa %s502, 1
    %504 = vsyncpa [#allocation5], 1
    %s505 = scalar_lea.sflag [#allocation5], 1
    %506 = vsyncpa %s505, 1

</llo_original>
